<compile_context>
chip_gen: v5e
topology: v5e:2x2
jax: 0.10.0
libtpu: 0.0.40
codegen_flags: <defaults>
</compile_context>

<pallas_src>
import jax
import jax.numpy as jnp
from jax import lax
from jax.experimental import pallas as pl
from jax.experimental.pallas import tpu as pltpu


# ----------------------------------------------------------------------------
# Segmentation cross-entropy (dominant path), native (B, C, N) layout.
# ----------------------------------------------------------------------------
def _make_seg_ce_kernel(n_total, tile_n, ignore_index):
    def kernel(logits_ref, labels_ref, out_ref):
        x = logits_ref[...].astype(jnp.float32)          # (C, TILE_N), cast in-register
        lab = labels_ref[...]                            # (1, TILE_N) int32
        c = x.shape[0]

        # Valid mask: in-range lanes of a (possibly partial) final tile AND not ignored.
        t_idx = pl.program_id(1)
        col = lax.broadcasted_iota(jnp.int32, (1, tile_n), 1)
        in_range = (t_idx * tile_n + col) < n_total
        valid = jnp.logical_and(in_range, lab != ignore_index)

        # log-softmax over the class (sublane) axis, per point (lane).
        row_max = jnp.max(x, axis=0, keepdims=True)                                # (1, TILE_N)
        lse = jnp.log(jnp.sum(jnp.exp(x - row_max), axis=0, keepdims=True)) + row_max
        cls_ids = lax.broadcasted_iota(jnp.int32, (c, tile_n), 0)
        picked = jnp.sum(jnp.where(cls_ids == lab, x, 0.0), axis=0, keepdims=True)
        nll = lse - picked                                                         # (1, TILE_N)

        # NaN-safe masking (padded lanes may hold garbage -> use where, not multiply).
        part_sum = jnp.sum(jnp.where(valid, nll, 0.0))
        part_cnt = jnp.sum(jnp.where(valid, 1.0, 0.0))

        # Pack per-tile partials into a private lane-dense (8, 128) block:
        # sublane 0 = sum, sublane 1 = count.
        row = lax.broadcasted_iota(jnp.int32, (8, 128), 0)
        out_ref[...] = jnp.where(row == 0, part_sum,
                                 jnp.where(row == 1, part_cnt, 0.0))

    return kernel


def _pick_tile_n(n, c, itemsize):
    """Lane-tile size: full N if small, otherwise a 128-multiple sized so one
    logits block stays ~<=2 MiB (safe under default scoped-VMEM limits with
    double buffering on v5e/v6e/v7x)."""
    if n <= 128:
        return int(n)
    budget_bytes = 2 * 1024 * 1024
    per_lane_bytes = c * max(int(itemsize), 4)           # f32 temporaries in-kernel
    t = max(128, (budget_bytes // per_lane_bytes) // 128 * 128)
    return int(min(t, (n // 128) * 128, 2048))


def _seg_cross_entropy_sums(seg_logit, seg_label, ignore_index=0):
    b, c, n = seg_logit.shape
    tile_n = _pick_tile_n(n, c, jnp.dtype(seg_logit.dtype).itemsize)
    num_tiles = pl.cdiv(n, tile_n)
    # (B, N) -> (B, 1, N) is a free metadata reshape (labels stay lane-dense).
    labels3 = seg_label.astype(jnp.int32).reshape(b, 1, n)

    kernel = _make_seg_ce_kernel(n, tile_n, ignore_index)
    partials = pl.pallas_call(
        kernel,
        grid=(b, num_tiles),
        in_specs=[
            pl.BlockSpec((None, c, tile_n), lambda bi, ti: (bi, 0, ti)),
            pl.BlockSpec((None, 1, tile_n), lambda bi, ti: (bi, 0, ti)),
        ],
        out_specs=pl.BlockSpec((None, None, 8, 128), lambda bi, ti: (bi, ti, 0, 0)),
        out_shape=jax.ShapeDtypeStruct((b, num_tiles, 8, 128), jnp.float32),
        compiler_params=pltpu.CompilerParams(
            dimension_semantics=("parallel", "parallel")),
    )(seg_logit, labels3)

    total_sum = jnp.sum(partials[:, :, 0, 0])
    total_cnt = jnp.sum(partials[:, :, 1, 0])
    return total_sum, total_cnt


# ----------------------------------------------------------------------------
# Fused auxiliary kernel: tiny cls cross-entropy (mean) + feature-transform
# regularizer sum_b ||T_b^T T_b - I||_F^2, one pallas_call, SMEM scalar outs.
# ----------------------------------------------------------------------------
def _make_aux_kernel(with_cls, with_reg):
    def kernel(*refs):
        i = 0
        if with_cls:
            cls_x_ref, cls_lab_ref = refs[i], refs[i + 1]
            i += 2
        if with_reg:
            tt_ref = refs[i]
            i += 1
        if with_cls:
            cls_out_ref = refs[i]
            i += 1
        if with_reg:
            reg_out_ref = refs[i]

        if with_cls:
            x = cls_x_ref[...].astype(jnp.float32)       # (B, KC)
            lab = cls_lab_ref[...]                       # (B, 1) int32
            bsz, kc = x.shape
            row_max = jnp.max(x, axis=1, keepdims=True)
            lse = jnp.log(jnp.sum(jnp.exp(x - row_max), axis=1, keepdims=True)) + row_max
            ids = lax.broadcasted_iota(jnp.int32, (bsz, kc), 1)
            picked = jnp.sum(jnp.where(ids == lab, x, 0.0), axis=1, keepdims=True)
            cls_out_ref[0, 0] = jnp.sum(lse - picked) / float(bsz)

        if with_reg:
            tt = tt_ref[...].astype(jnp.float32)         # (B, K, K) == trans^T
            k2 = tt.shape[1]
            # gram[b,i,j] = sum_k trans[b,k,i] * trans[b,k,j] = (T^T T)[b,i,j]
            # (single batched MXU matmul, contract-last-dims pattern)
            gram = jnp.einsum('bik,bjk->bij', tt, tt,
                              preferred_element_type=jnp.float32)
            eye = (lax.broadcasted_iota(jnp.int32, (k2, k2), 0)
                   == lax.broadcasted_iota(jnp.int32, (k2, k2), 1)).astype(jnp.float32)
            diff = gram - eye[None, :, :]
            reg_out_ref[0, 0] = jnp.sum(diff * diff)

    return kernel


def _aux_losses(cls_logit, cls_label, trans_feature, with_cls, with_reg):
    inputs = []
    out_shapes = []
    if with_cls:
        bsz = cls_logit.shape[0]
        inputs += [cls_logit, cls_label.astype(jnp.int32).reshape(bsz, 1)]
        out_shapes.append(jax.ShapeDtypeStruct((1, 1), jnp.float32))
    if with_reg:
        # trans_feature is tiny (B, K, K); the host transpose is negligible and
        # lets the kernel use the contract-last-dims batched matmul pattern.
        inputs.append(jnp.swapaxes(trans_feature, 1, 2))
        out_shapes.append(jax.ShapeDtypeStruct((1, 1), jnp.float32))

    outs = pl.pallas_call(
        _make_aux_kernel(with_cls, with_reg),
        out_shape=tuple(out_shapes),
        out_specs=tuple(pl.BlockSpec(memory_space=pltpu.MemorySpace.SMEM)
                        for _ in out_shapes),
    )(*inputs)

    cls_mean = reg_sum = None
    idx = 0
    if with_cls:
        cls_mean = outs[idx][0, 0]
        idx += 1
    if with_reg:
        reg_sum = outs[idx][0, 0]
    return cls_mean, reg_sum


# ----------------------------------------------------------------------------
# Module equivalent
# ----------------------------------------------------------------------------
class PointNetPartSegLoss:
    """JAX/Pallas port of the PyTorch PointNetPartSegLoss forward pass."""

    def __init__(self, reg_weight, cls_weight, seg_weight,
                 global_labels=True, masked=False):
        self.reg_weight = reg_weight
        self.cls_weight = cls_weight
        self.seg_weight = seg_weight
        self.global_labels = global_labels
        self.masked = masked

    def __call__(self, preds, labels):
        if self.masked:
            # TODO(synk): masked cross-entropy path (local_label_map) not implemented.
            raise NotImplementedError("masked cross-entropy path not implemented")

        seg_logit = preds['seg_logit']                      # (B, C, N)
        if self.global_labels:
            seg_label = labels['gt_label_global']
        else:
            seg_label = labels['gt_label']

        s, cnt = _seg_cross_entropy_sums(seg_logit, seg_label, ignore_index=0)
        # PyTorch yields NaN if every label is ignored; guard with 0.0 instead.
        seg_loss = jnp.where(cnt > 0, s / jnp.maximum(cnt, 1.0), 0.0)
        loss_dict = {'seg_loss': seg_loss * self.seg_weight}

        with_cls = self.cls_weight > 0.0
        with_reg = self.reg_weight > 0.0
        if with_cls or with_reg:
            cls_mean, reg_sum = _aux_losses(
                preds.get('cls_logit'), labels.get('gt_class_label'),
                preds.get('trans_feature'), with_cls, with_reg)
            if with_cls:
                loss_dict['cls_loss'] = cls_mean * self.cls_weight
            if with_reg:
                b_reg = preds['trans_feature'].shape[0]
                loss_dict['reg_loss'] = reg_sum * (0.5 * self.reg_weight / b_reg)
        return loss_dict


# ----------------------------------------------------------------------------
# Pure-JAX reference (for a sanity check in __main__)
# ----------------------------------------------------------------------------
def _reference_loss(preds, labels, reg_weight, cls_weight, seg_weight):
    seg_logit = preds['seg_logit'].astype(jnp.float32)
    seg_label = labels['gt_label_global'].astype(jnp.int32)
    logp = jax.nn.log_softmax(seg_logit, axis=1)
    ll = jnp.take_along_axis(logp, seg_label[:, None, :], axis=1)[:, 0, :]
    valid = (seg_label != 0).astype(jnp.float32)
    out = {'seg_loss': (-(ll * valid).sum() / valid.sum()) * seg_weight}
    if cls_weight > 0.0:
        cls_logit = preds['cls_logit'].astype(jnp.float32)
        cls_label = labels['gt_class_label'].astype(jnp.int32)
        logp_c = jax.nn.log_softmax(cls_logit, axis=1)
        ll_c = jnp.take_along_axis(logp_c, cls_label[:, None], axis=1)
        out['cls_loss'] = (-ll_c.mean()) * cls_weight
    if reg_weight > 0.0:
        t = preds['trans_feature'].astype(jnp.float32)
        tn = jnp.einsum('bki,bkj->bij', t, t)
        eye = jnp.eye(tn.shape[-1], dtype=jnp.float32)
        out['reg_loss'] = ((tn - eye) ** 2).sum() * (0.5 * reg_weight / t.shape[0])
    return out


def _make_inputs(key, B, C, N, KC, K):
    k1, k2, k3, k4, k5 = jax.random.split(key, 5)
    preds = {
        'seg_logit': jax.random.normal(k1, (B, C, N), dtype=jnp.float32),
        'cls_logit': jax.random.normal(k2, (B, KC), dtype=jnp.float32),
        'trans_feature': jax.random.normal(k3, (B, K, K), dtype=jnp.float32),
    }
    labels = {
        'gt_label_global': jax.random.randint(k4, (B, N), 0, C),
        'gt_class_label': jax.random.randint(k5, (B,), 0, KC),
    }
    return preds, labels


if __name__ == "__main__":
    key = jax.random.PRNGKey(0)
    loss_fn = PointNetPartSegLoss(reg_weight=1e-3, cls_weight=1.0, seg_weight=1.0)

    # Primary small case.
    B, C, N, KC, K = 2, 8, 16, 4, 8
    preds, labels = _make_inputs(key, B, C, N, KC, K)
    out = loss_fn(preds, labels)
    out = jax.tree_util.tree_map(jax.block_until_ready, out)
    ref = _reference_loss(preds, labels, reg_weight=1e-3, cls_weight=1.0, seg_weight=1.0)
    for k in ref:
        assert jnp.allclose(out[k], ref[k], rtol=1e-4, atol=1e-5), (k, out[k], ref[k])

    # Secondary case exercising a partial final point-tile + ignore_index lanes.
    preds2, labels2 = _make_inputs(jax.random.PRNGKey(1), 2, 8, 200, 4, 8)
    out2 = loss_fn(preds2, labels2)
    out2 = jax.tree_util.tree_map(jax.block_until_ready, out2)
    ref2 = _reference_loss(preds2, labels2, reg_weight=1e-3, cls_weight=1.0, seg_weight=1.0)
    for k in ref2:
        assert jnp.allclose(out2[k], ref2[k], rtol=1e-4, atol=1e-5), (k, out2[k], ref2[k])

    print("KERNEL_OK")
</pallas_src>

<mosaic_0001>
module attributes {stable_mosaic.version = 11 : i64} {
  func.func @kernel(%arg0: i32, %arg1: i32, %arg2: memref<1x8x16xf32, #tpu.memory_space<vmem>>, %arg3: memref<1x1x16xi32, #tpu.memory_space<vmem>>, %arg4: memref<1x1x8x128xf32, #tpu.memory_space<vmem>>) attributes {dimension_semantics = [#tpu.dimension_semantics<parallel>, #tpu.dimension_semantics<parallel>], iteration_bounds = array<i64: 2, 1>, scalar_prefetch = 0 : i64, scratch_operands = 0 : i64, tpu.core_type = #tpu.core_type<tc>, window_params = [{transform_indices = @transform_0, window_bounds = array<i64: 1, 8, 16>}, {transform_indices = @transform_1, window_bounds = array<i64: 1, 1, 16>}, {transform_indices = @transform_2, window_bounds = array<i64: 1, 1, 8, 128>}]} {
    %c0 = arith.constant 0 : index
    %c0_0 = arith.constant 0 : index
    %c0_1 = arith.constant 0 : index
    %0 = vector.load %arg2[%c0, %c0_0, %c0_1] : memref<1x8x16xf32, #tpu.memory_space<vmem>>, vector<1x8x16xf32>
    %1 = vector.shape_cast %0 : vector<1x8x16xf32> to vector<8x16xf32>
    %c0_2 = arith.constant 0 : index
    %c0_3 = arith.constant 0 : index
    %c0_4 = arith.constant 0 : index
    %2 = vector.load %arg3[%c0_2, %c0_3, %c0_4] : memref<1x1x16xi32, #tpu.memory_space<vmem>>, vector<1x1x16xi32>
    %3 = vector.shape_cast %2 : vector<1x1x16xi32> to vector<1x16xi32>
    %4 = tpu.iota {dimensions = array<i32: 1>} : vector<1x16xi32>
    %c16_i32 = arith.constant 16 : i32
    %5 = arith.muli %arg1, %c16_i32 : i32
    %6 = vector.broadcast %5 : i32 to vector<1x16xi32>
    %7 = arith.addi %6, %4 : vector<1x16xi32>
    %c16_i32_5 = arith.constant 16 : i32
    %8 = vector.broadcast %c16_i32_5 : i32 to vector<1x16xi32>
    %9 = arith.cmpi slt, %7, %8 : vector<1x16xi32>
    %c0_i32 = arith.constant 0 : i32
    %10 = vector.broadcast %c0_i32 : i32 to vector<1x16xi32>
    %11 = arith.cmpi ne, %3, %10 : vector<1x16xi32>
    %12 = arith.andi %9, %11 : vector<1x16xi1>
    %cst = arith.constant dense<0xFF800000> : vector<16xf32>
    %13 = vector.multi_reduction <maximumf>, %1, %cst [0] : vector<8x16xf32> to vector<16xf32>
    %14 = vector.shape_cast %13 : vector<16xf32> to vector<1x16xf32>
    %15 = vector.broadcast %14 : vector<1x16xf32> to vector<8x16xf32>
    %16 = arith.subf %1, %15 : vector<8x16xf32>
    %17 = math.exp %16 : vector<8x16xf32>
    %cst_6 = arith.constant dense<0.000000e+00> : vector<16xf32>
    %18 = vector.multi_reduction <add>, %17, %cst_6 [0] : vector<8x16xf32> to vector<16xf32>
    %19 = vector.shape_cast %18 : vector<16xf32> to vector<1x16xf32>
    %20 = math.log %19 : vector<1x16xf32>
    %21 = arith.addf %20, %14 : vector<1x16xf32>
    %22 = tpu.iota {dimensions = array<i32: 0>} : vector<8x16xi32>
    %23 = vector.broadcast %3 : vector<1x16xi32> to vector<8x16xi32>
    %24 = arith.cmpi eq, %22, %23 : vector<8x16xi32>
    %cst_7 = arith.constant 0.000000e+00 : f32
    %25 = vector.broadcast %cst_7 : f32 to vector<8x16xf32>
    %26 = arith.select %24, %1, %25 : vector<8x16xi1>, vector<8x16xf32>
    %cst_8 = arith.constant dense<0.000000e+00> : vector<16xf32>
    %27 = vector.multi_reduction <add>, %26, %cst_8 [0] : vector<8x16xf32> to vector<16xf32>
    %28 = vector.shape_cast %27 : vector<16xf32> to vector<1x16xf32>
    %29 = arith.subf %21, %28 : vector<1x16xf32>
    %cst_9 = arith.constant 0.000000e+00 : f32
    %30 = vector.broadcast %cst_9 : f32 to vector<1x16xf32>
    %31 = arith.select %12, %29, %30 : vector<1x16xi1>, vector<1x16xf32>
    %32 = vector.shape_cast %31 : vector<1x16xf32> to vector<1x1x16xf32>
    %cst_10 = arith.constant dense<0.000000e+00> : vector<1xf32>
    %33 = vector.multi_reduction <add>, %32, %cst_10 [1, 2] : vector<1x1x16xf32> to vector<1xf32>
    %34 = vector.shape_cast %33 : vector<1xf32> to vector<1x1x1xf32>
    %35 = vector.extract %34[0, 0, 0] : f32 from vector<1x1x1xf32>
    %cst_11 = arith.constant 1.000000e+00 : f32
    %cst_12 = arith.constant 0.000000e+00 : f32
    %36 = vector.broadcast %cst_11 : f32 to vector<1x16xf32>
    %37 = vector.broadcast %cst_12 : f32 to vector<1x16xf32>
    %38 = arith.select %12, %36, %37 : vector<1x16xi1>, vector<1x16xf32>
    %39 = vector.shape_cast %38 : vector<1x16xf32> to vector<1x1x16xf32>
    %cst_13 = arith.constant dense<0.000000e+00> : vector<1xf32>
    %40 = vector.multi_reduction <add>, %39, %cst_13 [1, 2] : vector<1x1x16xf32> to vector<1xf32>
    %41 = vector.shape_cast %40 : vector<1xf32> to vector<1x1x1xf32>
    %42 = vector.extract %41[0, 0, 0] : f32 from vector<1x1x1xf32>
    %43 = tpu.iota {dimensions = array<i32: 0>} : vector<8x128xi32>
    %c0_i32_14 = arith.constant 0 : i32
    %44 = vector.broadcast %c0_i32_14 : i32 to vector<8x128xi32>
    %45 = arith.cmpi eq, %43, %44 : vector<8x128xi32>
    %c1_i32 = arith.constant 1 : i32
    %46 = vector.broadcast %c1_i32 : i32 to vector<8x128xi32>
    %47 = arith.cmpi eq, %43, %46 : vector<8x128xi32>
    %cst_15 = arith.constant 0.000000e+00 : f32
    %48 = vector.broadcast %42 : f32 to vector<8x128xf32>
    %49 = vector.broadcast %cst_15 : f32 to vector<8x128xf32>
    %50 = arith.select %47, %48, %49 : vector<8x128xi1>, vector<8x128xf32>
    %51 = vector.broadcast %35 : f32 to vector<8x128xf32>
    %52 = arith.select %45, %51, %50 : vector<8x128xi1>, vector<8x128xf32>
    %c0_16 = arith.constant 0 : index
    %c0_17 = arith.constant 0 : index
    %c0_18 = arith.constant 0 : index
    %c0_19 = arith.constant 0 : index
    %53 = vector.load %arg4[%c0_16, %c0_17, %c0_18, %c0_19] : memref<1x1x8x128xf32, #tpu.memory_space<vmem>>, vector<1x1x8x128xf32>
    %54 = vector.shape_cast %53 : vector<1x1x8x128xf32> to vector<8x128xf32>
    %55 = vector.shape_cast %52 : vector<8x128xf32> to vector<1x1x8x128xf32>
    tpu.vector_store %arg4[%c0_16, %c0_17, %c0_18, %c0_19], %55 {strides = array<i32>} : memref<1x1x8x128xf32, #tpu.memory_space<vmem>>, vector<1x1x8x128xf32>,
    return
  }
  func.func @transform_0(%arg0: i32, %arg1: i32) -> (i32, i32, i32) {
    %c0_i32 = arith.constant 0 : i32
    %c0_i32_0 = arith.constant 0 : i32
    return %arg0, %c0_i32, %arg1 : i32, i32, i32
  }
  func.func @transform_1(%arg0: i32, %arg1: i32) -> (i32, i32, i32) {
    %c0_i32 = arith.constant 0 : i32
    %c0_i32_0 = arith.constant 0 : i32
    return %arg0, %c0_i32, %arg1 : i32, i32, i32
  }
  func.func @transform_2(%arg0: i32, %arg1: i32) -> (i32, i32, i32, i32) {
    %c0_i32 = arith.constant 0 : i32
    %c0_i32_0 = arith.constant 0 : i32
    %c0_i32_1 = arith.constant 0 : i32
    return %arg0, %arg1, %c0_i32, %c0_i32_0 : i32, i32, i32, i32
  }
}

</mosaic_0001>

<llo_original>
// kernel: tpu_custom_call.1
$region0: #{tpu_custom_call.1}
  #allocation0 [shape = 'u32[]', space=smem, size = 0x4, offset = 0x4, fixed_abs, tag = 'smem constant byte address 0x4 - core index']
  #allocation1 [shape = 'u32[72,128]{1,0:T(1,128)}', space=vmem, size = 0x9000, scoped, tag = 'internal scratch']
  %s0 = inlined_call_operand.hbm [shape: f32[2,8,16], index: 0, kind: input, shape index: {}]
  %s1 = inlined_call_operand.hbm [shape: s32[2,1,16], index: 1, kind: input, shape index: {}]
  %s2 = inlined_call_operand.hbm [shape: f32[2,1,8,128], index: 2, kind: output, shape index: {}]
  %s3 = sld [smem:[#allocation0]]
  $region49: #{tpu_custom_call.1} parent=0
    _
  %s5 = ssub.s32 1, %s3
  %s6 = scalar_select 0, %s5, %s3
  $region1: #{tpu_custom_call.1} parent=0
    #allocation2 [shape = 'u8[8192]{0}', space=vmem, size = 0x2000, scoped, tag = 'input window, operand 0']
    #allocation3 [shape = 's32[2]{0}', space=sflag, size = 0x8, scoped, tag = 'scoped memory for tpu_custom_call.1']
    #allocation4 [shape = 's32[2]{0}', space=sflag, size = 0x8, scoped, tag = 'scoped memory for tpu_custom_call.1']
    #allocation5 [shape = 'u8[1024]{0}', space=vmem, size = 0x400, scoped, tag = 'input window, operand 1']
    #allocation6 [shape = 's32[2]{0}', space=sflag, size = 0x8, scoped, tag = 'scoped memory for tpu_custom_call.1']
    #allocation7 [shape = 'u8[8192]{0}', space=vmem, size = 0x2000, scoped, tag = 'output window, operand 0']
    %7 = vsyncpa [#allocation3], 0
    %s8 = scalar_lea.sflag [#allocation3], 1
    %9 = vsyncpa %s8, 0
    %10 = vsyncpa [#allocation6], 0
    %s11 = scalar_lea.sflag [#allocation6], 1
    %12 = vsyncpa %s11, 0
    %13 = vsyncpa [#allocation4], 0
    %s14 = scalar_lea.sflag [#allocation4], 1
    %15 = vsyncpa %s14, 0
    loop: start=0, step=1, limit=4
    $region2: #{tpu_custom_call.1} parent=1 // loop_pre_header
      _
    $region3: #{tpu_custom_call.1} parent=1 // loop_header
      %s17 = sphi 0, %s21
      %p18 = scmp.ge.s32.totalorder %s17, 4
      %s24 = sphi 0, %s36
      %s25 = sphi 0, %s32
      %s26 = sphi 0, %s24
      %s27 = sphi 0, %s25
      %s28 = sphi 0, %s26
      %s29 = sphi 0, %s27
      %s41 = sphi 0, %s43
      %s44 = sphi 0, %s41
      %s45 = sphi 0, %s44
      %s61 = sphi 0, %s45
      %s69 = sphi 0, %s71
      %s72 = sphi 0, %s69
      %s73 = sphi 0, %s72
      %s89 = sphi 0, %s73
      %s97 = sphi 0, %s99
      %s100 = sphi 0, %s97
      %s101 = sphi 0, %s100
      %s117 = sphi 0, %s101
    $region4: #{tpu_custom_call.1} parent=1 // loop_header_branch
      %20 = sbr.rel (%p18) target = $region8
    $region5: #{tpu_custom_call.1} parent=1 // loop_body
      %s22 = ssub.s32 %s17, 1
      %s23 = ssub.s32 %s17, 2
      %s30 = sadd.s32 1, %s25
      %p31 = scmp.ge.s32.totalorder %s30, 1
      %s32 = scalar_select %p31, 0, %s30
      %s33 = sadd.s32 1, %s24
      %s34 = scalar_select %p31, %s33, %s24
      %p35 = scmp.ge.s32.totalorder %s34, 2
      %s36 = scalar_select %p35, 0, %s34
      %s37 = ssub.s32 %s24, %s36
      %s38 = ssub.s32 %s25, %s32
      %s39 = sor.u32 %s37, %s38
      %p40 = scmp.eq.s32.totalorder %s39, 0
      %s42 = sadd.s32 %s41, 1
      %s43 = scalar_select %p40, %s41, %s42
      %p46 = pneg %p40
      %p47 = scmp.eq.s32.totalorder %s17, 1
      %p48 = por %p46, %p47
      %p49 = scmp.ne.s32.totalorder %s41, %s44
      %p50 = scmp.eq.s32.totalorder %s17, 0
      %p51 = por %p49, %p50
      %p52 = scmp.ne.s32.totalorder %s41, %s44
      %p53 = scmp.eq.s32.totalorder %s22, 1
      %p54 = por %p52, %p53
      %p55 = scmp.ne.s32.totalorder %s44, %s45
      %p56 = scmp.eq.s32.totalorder %s22, 0
      %p57 = por %p55, %p56
      %p58 = scmp.ne.s32.totalorder %s44, %s45
      %p59 = scmp.eq.s32.totalorder %s23, 1
      %p60 = por %p58, %p59
      %p62 = scmp.ne.s32.totalorder %s45, %s61
      %p63 = scmp.eq.s32.totalorder %s23, 0
      %p64 = por %p62, %p63
      %s65 = ssub.s32 %s24, %s36
      %s66 = ssub.s32 %s25, %s32
      %s67 = sor.u32 %s65, %s66
      %p68 = scmp.eq.s32.totalorder %s67, 0
      %s70 = sadd.s32 %s69, 1
      %s71 = scalar_select %p68, %s69, %s70
      %p74 = pneg %p68
      %p75 = scmp.eq.s32.totalorder %s17, 1
      %p76 = por %p74, %p75
      %p77 = scmp.ne.s32.totalorder %s69, %s72
      %p78 = scmp.eq.s32.totalorder %s17, 0
      %p79 = por %p77, %p78
      %p80 = scmp.ne.s32.totalorder %s69, %s72
      %p81 = scmp.eq.s32.totalorder %s22, 1
      %p82 = por %p80, %p81
      %p83 = scmp.ne.s32.totalorder %s72, %s73
      %p84 = scmp.eq.s32.totalorder %s22, 0
      %p85 = por %p83, %p84
      %p86 = scmp.ne.s32.totalorder %s72, %s73
      %p87 = scmp.eq.s32.totalorder %s23, 1
      %p88 = por %p86, %p87
      %p90 = scmp.ne.s32.totalorder %s73, %s89
      %p91 = scmp.eq.s32.totalorder %s23, 0
      %p92 = por %p90, %p91
      %s93 = ssub.s32 %s24, %s36
      %s94 = ssub.s32 %s25, %s32
      %s95 = sor.u32 %s93, %s94
      %p96 = scmp.eq.s32.totalorder %s95, 0
      %s98 = sadd.s32 %s97, 1
      %s99 = scalar_select %p96, %s97, %s98
      %p102 = pneg %p96
      %p103 = scmp.eq.s32.totalorder %s17, 1
      %p104 = por %p102, %p103
      %p105 = scmp.ne.s32.totalorder %s97, %s100
      %p106 = scmp.eq.s32.totalorder %s17, 0
      %p107 = por %p105, %p106
      %p108 = scmp.ne.s32.totalorder %s97, %s100
      %p109 = scmp.eq.s32.totalorder %s22, 1
      %p110 = por %p108, %p109
      %p111 = scmp.ne.s32.totalorder %s100, %s101
      %p112 = scmp.eq.s32.totalorder %s22, 0
      %p113 = por %p111, %p112
      %p114 = scmp.ne.s32.totalorder %s100, %s101
      %p115 = scmp.eq.s32.totalorder %s23, 1
      %p116 = por %p114, %p115
      %p118 = scmp.ne.s32.totalorder %s101, %s117
      %p119 = scmp.eq.s32.totalorder %s23, 0
      %p120 = por %p118, %p119
      %p121 = scmp.le.s32.totalorder 1, %s17
      %p122 = scmp.lt.s32.totalorder %s17, 3
      %p123 = pnand %p121, %p122
      %p124 = pneg %p123
      // Predicated region
      $region9: #{tpu_custom_call.1} parent=5 // pred_check
        _
      $region10: #{tpu_custom_call.1} parent=5 // pred_check_branch
        %126 = sbr.rel (%p123) target = $region12
      $region11: #{tpu_custom_call.1} parent=5 // pred_region
        %s127 = ssub.s32 %s17, 1
      $region12: #{tpu_custom_call.1} parent=5 // pred_fallthru
        _
      %p128 = scmp.lt.s32.totalorder %s17, 2
      // Predicated region
      $region13: #{tpu_custom_call.1} parent=5 // pred_check
        %p129 = pneg %p128
      $region14: #{tpu_custom_call.1} parent=5 // pred_check_branch
        %131 = sbr.rel (%p129) target = $region16
      $region15: #{tpu_custom_call.1} parent=5 // pred_region
        // Predicated region
        $region17: #{tpu_custom_call.1} parent=15 // pred_check
          %p132 = pneg %p51
        $region18: #{tpu_custom_call.1} parent=15 // pred_check_branch
          %134 = sbr.rel (%p132) target = $region20
        $region19: #{tpu_custom_call.1} parent=15 // pred_region
          %s135 = sand.u32 %s41, 1
          %s136 = scalar_lea.sflag [#allocation3], %s135
          %s137 = sand.u32 %s41, 1
          %s138 = smul.addr %s137, 8
          %s139 = scalar_lea.vmem [#allocation2], %s138
          %141 = vsyncadd %s136, 0
          %s142 = sadd.s32 %s25, %s24
          %s143 = smul.addr %s142, 8
          %s144 = scalar_lea.hbm %s0, %s143
          %s146 = sshll.u32 %s144, 4
          %s147 = int_to_ptr.hbm [resolvable:$true] %s146
          %s148 = sshll.u32 %s139, 4
          %s149 = int_to_ptr.vmem [resolvable:$true] %s148
          %151 = dma.hbm_to_vmem [thread:$0]  %s147, 128, %s149, %s136
        $region20: #{tpu_custom_call.1} parent=15 // pred_fallthru
          _
        // Predicated region
        $region21: #{tpu_custom_call.1} parent=15 // pred_check
          %p152 = pneg %p79
        $region22: #{tpu_custom_call.1} parent=15 // pred_check_branch
          %154 = sbr.rel (%p152) target = $region24
        $region23: #{tpu_custom_call.1} parent=15 // pred_region
          %s155 = sand.u32 %s69, 1
          %s156 = scalar_lea.sflag [#allocation6], %s155
          %s157 = sand.u32 %s69, 1
          %s158 = scalar_lea.vmem [#allocation5], %s157
          %160 = vsyncadd %s156, 0
          %s161 = sadd.s32 %s25, %s24
          %s162 = scalar_lea.hbm %s1, %s161
          %s164 = sshll.u32 %s162, 4
          %s165 = int_to_ptr.hbm [resolvable:$true] %s164
          %s166 = sshll.u32 %s158, 4
          %s167 = int_to_ptr.vmem [resolvable:$true] %s166
          %169 = dma.hbm_to_vmem [thread:$0]  %s165, 16, %s167, %s156
        $region24: #{tpu_custom_call.1} parent=15 // pred_fallthru
          _
      $region16: #{tpu_custom_call.1} parent=5 // pred_fallthru
        _
      %p170 = scmp.le.s32.totalorder 1, %s17
      %p171 = scmp.lt.s32.totalorder %s17, 3
      %p172 = pnand %p170, %p171
      %p173 = pneg %p172
      // Predicated region
      $region25: #{tpu_custom_call.1} parent=5 // pred_check
        _
      $region26: #{tpu_custom_call.1} parent=5 // pred_check_branch
        %175 = sbr.rel (%p172) target = $region28
      $region27: #{tpu_custom_call.1} parent=5 // pred_region
        %s176 = ssub.s32 %s17, 1
        %s177 = sand.u32 %s44, 1
        %s178 = scalar_lea.sflag [#allocation3], %s177
        %s179 = sand.u32 %s44, 1
        %s180 = smul.addr %s179, 8
        %s181 = scalar_lea.vmem [#allocation2], %s180
        // Predicated region
        $region29: #{tpu_custom_call.1} parent=27 // pred_check
          %p182 = pneg %p57
        $region30: #{tpu_custom_call.1} parent=27 // pred_check_branch
          %184 = sbr.rel (%p182) target = $region32
        $region31: #{tpu_custom_call.1} parent=27 // pred_region
          %186 = dma.done %s178, 128
        $region32: #{tpu_custom_call.1} parent=27 // pred_fallthru
          _
        %s187 = sand.u32 %s72, 1
        %s188 = scalar_lea.sflag [#allocation6], %s187
        %s189 = sand.u32 %s72, 1
        %s190 = scalar_lea.vmem [#allocation5], %s189
        // Predicated region
        $region33: #{tpu_custom_call.1} parent=27 // pred_check
          %p191 = pneg %p85
        $region34: #{tpu_custom_call.1} parent=27 // pred_check_branch
          %193 = sbr.rel (%p191) target = $region36
        $region35: #{tpu_custom_call.1} parent=27 // pred_region
          %195 = dma.done %s188, 16
        $region36: #{tpu_custom_call.1} parent=27 // pred_fallthru
          _
        %s196 = sand.u32 %s44, 1
        %s197 = scalar_lea.sflag [#allocation3], %s196
        %s198 = sand.u32 %s44, 1
        %s199 = smul.addr %s198, 8
        %s200 = scalar_lea.vmem [#allocation2], %s199
        %p201 = pneg %p57
        %p202 = pneg %p54
        %s203 = sand.u32 %s72, 1
        %s204 = scalar_lea.sflag [#allocation6], %s203
        %s205 = sand.u32 %s72, 1
        %s206 = scalar_lea.vmem [#allocation5], %s205
        %p207 = pneg %p85
        %p208 = pneg %p82
        %p209 = pneg %p113
        %p210 = pneg %p110
        %s211 = sand.u32 %s100, 1
        %s212 = scalar_lea.sflag [#allocation4], %s211
        %s213 = sand.u32 %s100, 1
        %s214 = smul.addr %s213, 8
        %s215 = scalar_lea.vmem [#allocation7], %s214
        %v216 = vld [vmem:[%s181] sm:$0xff]
        %v217 = vld [vmem:[%s190] sm:$0x1]
        %v218 = vlaneseq
        %v219 = vand.u32 %v218, 127
        %s220 = smul.u32 %s27, 16
        %v221 = vstv %s220
        %v222 = vadd.s32 %v221, %v219
        %vm223 = vcmp.lt.s32.totalorder %v222, 16
        %vm224 = vcmp.ne.s32.totalorder %v217, 0
        %vm225 = vmand %vm223, %vm224
        %vm226 = vcmask 130048
        %v227 = vsel %vm226, %v216, -inf
        %v228 = vrot.slane %v227, 4
        %v229 = vmax.f32 %v227, %v228
        %v230 = vrot.slane %v229, 2
        %v231 = vmax.f32 %v229, %v230
        %v232 = vrot.slane %v231, 1
        %v233 = vmax.f32 %v231, %v232
        %v234 = vsub.f32 %v216, %v233
        %v235 = vmul.f32 %v234, 1.442695
        %v236 = vpow.pop %v235
        %v237 = vsel %vm226, %v236, 0.0
        %v238 = vrot.slane %v237, 4
        %v239 = vadd.f32 %v237, %v238
        %v240 = vrot.slane %v239, 2
        %v241 = vadd.f32 %v239, %v240
        %v242 = vrot.slane %v241, 1
        %v243 = vadd.f32 %v241, %v242
        %v244 = vlog2.pop %v243
        %v245 = vmul.f32 %v244, 0.6931472
        %v246 = vadd.f32 %v245, %v233
        %v247 = vlaneseq
        %v248 = vshrl.u32 %v247, 7
        %v249 = vperm.slane %v217, 0
        %vm250 = vcmp.eq.s32.totalorder %v248, %v249
        %v251 = vsel %vm250, %v216, 0.0
        %v252 = vsel %vm226, %v251, 0.0
        %v253 = vrot.slane %v252, 4
        %v254 = vadd.f32 %v252, %v253
        %v255 = vrot.slane %v254, 2
        %v256 = vadd.f32 %v254, %v255
        %v257 = vrot.slane %v256, 1
        %v258 = vadd.f32 %v256, %v257
        %v259 = vsub.f32 %v246, %v258
        %v260 = vsel %vm225, %v259, 0.0
        %vm261 = vcmask 122880
        %v262 = vsel %vm261, %v260, 0.0
        %263 = vadd.xlane.f32.xlu0 %v262
        %v264 = vpop.xlane.xlu0 %263
        %v265 = vrot.slane %v264, 4
        %v266 = vadd.f32 %v264, %v265
        %v267 = vrot.slane %v266, 2
        %v268 = vadd.f32 %v266, %v267
        %v269 = vrot.slane %v268, 1
        %v270 = vadd.f32 %v268, %v269
        %s271 = vtos %v270
        %v272 = vsel %vm225, 1.0, 0.0
        %v273 = vsel %vm261, %v272, 0.0
        %274 = vadd.xlane.f32.xlu0 %v273
        %v275 = vpop.xlane.xlu0 %274
        %v276 = vrot.slane %v275, 4
        %v277 = vadd.f32 %v275, %v276
        %v278 = vrot.slane %v277, 2
        %v279 = vadd.f32 %v277, %v278
        %v280 = vrot.slane %v279, 1
        %v281 = vadd.f32 %v279, %v280
        %s282 = vtos %v281
        %vm283 = vcmp.eq.s32.totalorder %v248, 0
        %vm284 = vcmp.eq.s32.totalorder %v248, 1
        %v285 = vstv %s282
        %v286 = vsel %vm284, %v285, 0.0
        %v287 = vstv %s271
        %v288 = vsel %vm283, %v287, %v286
        %289 = vst [vmem:[%s215] sm:$0xff] %v288
        %s290 = sand.u32 %s100, 1
        %s291 = scalar_lea.sflag [#allocation4], %s290
        %s292 = sand.u32 %s100, 1
        %s293 = smul.addr %s292, 8
        %s294 = scalar_lea.vmem [#allocation7], %s293
        // Predicated region
        $region37: #{tpu_custom_call.1} parent=27 // pred_check
          %p295 = pneg %p110
        $region38: #{tpu_custom_call.1} parent=27 // pred_check_branch
          %297 = sbr.rel (%p295) target = $region40
        $region39: #{tpu_custom_call.1} parent=27 // pred_region
          %299 = vsyncadd %s291, 0
          %s300 = sadd.s32 %s27, %s26
          %s301 = smul.addr %s300, 8
          %s302 = scalar_lea.hbm %s2, %s301
          %s304 = sshll.u32 %s294, 4
          %s305 = int_to_ptr.vmem [resolvable:$true] %s304
          %s306 = sshll.u32 %s302, 4
          %s307 = int_to_ptr.hbm [resolvable:$true] %s306
          %309 = dma.vmem_to_hbm [thread:$0]  %s305, 128, %s307, %s291
        $region40: #{tpu_custom_call.1} parent=27 // pred_fallthru
          _
      $region28: #{tpu_custom_call.1} parent=5 // pred_fallthru
        _
      %p310 = scmp.le.s32.totalorder 2, %s17
      // Predicated region
      $region41: #{tpu_custom_call.1} parent=5 // pred_check
        %p311 = pneg %p310
      $region42: #{tpu_custom_call.1} parent=5 // pred_check_branch
        %313 = sbr.rel (%p311) target = $region44
      $region43: #{tpu_custom_call.1} parent=5 // pred_region
        %s314 = ssub.s32 %s17, 2
        // Predicated region
        $region45: #{tpu_custom_call.1} parent=43 // pred_check
          %p315 = pneg %p116
        $region46: #{tpu_custom_call.1} parent=43 // pred_check_branch
          %317 = sbr.rel (%p315) target = $region48
        $region47: #{tpu_custom_call.1} parent=43 // pred_region
          %s318 = sand.u32 %s101, 1
          %s319 = scalar_lea.sflag [#allocation4], %s318
          %s320 = sand.u32 %s101, 1
          %s321 = smul.addr %s320, 8
          %s322 = scalar_lea.vmem [#allocation7], %s321
          %324 = dma.done %s319, 128
        $region48: #{tpu_custom_call.1} parent=43 // pred_fallthru
          _
      $region44: #{tpu_custom_call.1} parent=5 // pred_fallthru
        _
    $region6: #{tpu_custom_call.1} parent=1 // loop_footer
      %s21 = sadd.s32 1, %s17
    $region7: #{tpu_custom_call.1} parent=1 // loop_footer_branch
      %16 = sbr.rel target = $region3
    $region8: #{tpu_custom_call.1} parent=1 // loop_exit
      _
    %325 = vsyncpa [#allocation3], 1
    %s326 = scalar_lea.sflag [#allocation3], 1
    %327 = vsyncpa %s326, 1
    %328 = vsyncpa [#allocation6], 1
    %s329 = scalar_lea.sflag [#allocation6], 1
    %330 = vsyncpa %s329, 1
    %331 = vsyncpa [#allocation4], 1
    %s332 = scalar_lea.sflag [#allocation4], 1
    %333 = vsyncpa %s332, 1

</llo_original>
